<compile_context>
chip_gen: v5e
topology: v5e:2x2
jax: 0.10.0
libtpu: 0.0.40
codegen_flags: <defaults>
</compile_context>

<pallas_src>
import functools
import math

import jax
import jax.numpy as jnp
from jax import lax
from jax.experimental import pallas as pl
from jax.experimental.pallas import tpu as pltpu


def _round_up(a: int, b: int) -> int:
    return (a + b - 1) // b * b


# --------------------------------------------------------------------------- #
# Kernels
# --------------------------------------------------------------------------- #
def _make_selector(nt, kp, g, base, scale, dtype, n_valid=None):
    """Block-diagonal group indicator, generated on the VPU (no HBM stream).

    sel[r, c] = scale  iff  (base + r) // g == c  (and base + r < n_valid).
    Written without an integer divide: r // g == c  <=>  c*g <= r < (c+1)*g.
    """
    row = lax.broadcasted_iota(jnp.int32, (nt, kp), 0) + base
    col = lax.broadcasted_iota(jnp.int32, (nt, kp), 1)
    lo = col * g
    mask = (row >= lo) & (row < lo + g)
    if n_valid is not None:
        mask = mask & (row < n_valid)
    return jnp.where(mask, scale, 0.0).astype(dtype)


def _group_sum_kernel_direct(x_ref, o_ref, *, g, sel_scale, out_scale, precision):
    """Fast path: whole feature axis in one chunk -> no accumulator round-trip."""
    nt = x_ref.shape[-1]
    kp = o_ref.shape[-1]
    sel = _make_selector(nt, kp, g, 0, sel_scale, x_ref.dtype)
    acc = jnp.dot(x_ref[...], sel,
                  preferred_element_type=jnp.float32, precision=precision)
    if out_scale != 1.0:
        acc = acc * out_scale
    o_ref[...] = acc.astype(o_ref.dtype)


def _group_sum_kernel_chunked(x_ref, o_ref, acc_ref, *, g, n, sel_scale, out_scale,
                              precision, ragged):
    """Feature-chunked path: f32 accumulator resident across the reduction axis."""
    j = pl.program_id(1)
    nt = x_ref.shape[-1]
    kp = o_ref.shape[-1]
    base = j * nt

    @pl.when(j == 0)
    def _():
        acc_ref[...] = jnp.zeros_like(acc_ref)

    sel = _make_selector(nt, kp, g, base, sel_scale, x_ref.dtype,
                         n_valid=n if ragged else None)
    x = x_ref[...]
    if ragged:
        # Zero out-of-range feature columns of the last (partial) chunk so stale /
        # garbage VMEM (possibly NaN bit patterns) never reaches the MXU.
        cmask = (lax.broadcasted_iota(jnp.int32, x.shape, 1) + base) < n
        x = jnp.where(cmask, x, jnp.zeros_like(x))

    acc_ref[...] += jnp.dot(x, sel,
                            preferred_element_type=jnp.float32, precision=precision)

    @pl.when(j == pl.num_programs(1) - 1)
    def _():
        acc = acc_ref[...]
        if out_scale != 1.0:
            acc = acc * out_scale
        o_ref[...] = acc.astype(o_ref.dtype)


# --------------------------------------------------------------------------- #
# Wrapper
# --------------------------------------------------------------------------- #
def _vmem_budget_bytes():
    """(tiling budget, scoped vmem limit) chosen per chip generation."""
    cap = None
    try:
        cap = getattr(pltpu.get_tpu_info(), "vmem_capacity_bytes", None)
    except Exception:
        cap = None
    if not cap:
        cap = 64 * 1024 * 1024                       # assume the smallest (v7x per-TC)
    if cap >= 96 * 1024 * 1024:                      # v5e / v6e: 128 MiB physical VMEM
        return 48 * 1024 * 1024, 100 * 1024 * 1024
    return 20 * 1024 * 1024, 40 * 1024 * 1024        # v7x: 64 MiB physical, stay safe


def _pick_tiles(B, N, Kp, in_itemsize, out_itemsize, row_align, budget):
    """Pick (TB, NT, n_chunks, ragged): batch tile first, feature chunk from the rest."""

    def max_nt(tb):
        # double-buffered input + double-buffered output + f32 acc scratch
        # + in-kernel selector temporaries (~3 f32 copies of (NT, Kp)).
        fixed = 2 * tb * Kp * out_itemsize + tb * Kp * 4
        per_nt = 2 * tb * in_itemsize + 3 * Kp * 4
        return (budget - fixed) // per_nt if budget > fixed else 0

    # Batch tile: as large as possible (<= 512 rows), aligned to sublane packing,
    # but keep >= 2 batch tiles whenever the batch allows it so a 2-TensorCore
    # chip (v7x) can shard the "parallel" axis across both cores.
    tb = min(512, _round_up(B, row_align))
    if B >= 2 * row_align and pl.cdiv(B, tb) < 2:
        tb = _round_up(pl.cdiv(B, 2), row_align)
    while tb > row_align and max_nt(tb) < min(N, 128):
        tb = max(row_align, _round_up(tb // 2, row_align))

    nt_allow = max_nt(tb)
    if nt_allow >= N:
        return tb, N, 1, False

    # Feature chunking: NT multiple of 128; prefer an exact divisor of N so the
    # last chunk is not ragged (no in-kernel masking needed).
    nt_cap = max(128, (nt_allow // 128) * 128)
    nt = None
    for cand in range(nt_cap, 127, -128):
        if N % cand == 0:
            nt = cand
            break
    ragged = nt is None
    if ragged:
        nt = nt_cap
    return tb, nt, pl.cdiv(N, nt), ragged


def group_sum(x: jax.Array, k: int, tau: float = 1.0, training: bool = True,
              use_bf16: bool = False, _tile_b=None, _tile_n=None) -> jax.Array:
    """Pallas TPU implementation of difflogic.GroupSum.forward."""
    assert x.shape[-1] % k == 0, (x.shape, k)
    N = x.shape[-1]
    g = N // k
    lead = x.shape[:-1]
    B = math.prod(lead) if lead else 1

    if not jnp.issubdtype(x.dtype, jnp.floating):
        # TODO(synk): integer inputs are summed in f32 (inexact vs torch int sum for huge ints).
        x = x.astype(jnp.float32)
    out_dtype = x.dtype
    if use_bf16:
        compute_dtype = jnp.bfloat16     # opt-in: halves HBM bytes, native MXU rate on v5e
    elif x.dtype in (jnp.float32, jnp.bfloat16):
        compute_dtype = x.dtype
    else:
        compute_dtype = jnp.float32
    x2 = x.reshape(B, N).astype(compute_dtype)

    in_itemsize = jnp.dtype(compute_dtype).itemsize
    out_itemsize = jnp.dtype(out_dtype).itemsize
    row_align = 8 if in_itemsize >= 4 else (16 if in_itemsize == 2 else 32)
    Kp = _round_up(k, 128)               # lane-dense output width

    budget, vmem_limit = _vmem_budget_bytes()
    TB, NT, n_chunks, ragged = _pick_tiles(B, N, Kp, in_itemsize, out_itemsize,
                                           row_align, budget)
    if _tile_b is not None or _tile_n is not None:   # test hook: force tiling
        TB = _round_up(_tile_b, row_align) if _tile_b is not None else TB
        NT = _tile_n if _tile_n is not None else NT
        n_chunks = pl.cdiv(N, NT)
        ragged = (N % NT) != 0

    scale = (1.0 / tau) if training else 1.0
    if compute_dtype == jnp.float32:
        sel_scale, out_scale = scale, 1.0        # fold 1/tau into the selector (exact in f32)
        precision = lax.Precision.HIGHEST        # never truncate the f32 sum to one bf16 pass
    else:
        sel_scale, out_scale = 1.0, scale        # keep the scale in the f32 epilogue for bf16
        precision = None

    nb = pl.cdiv(B, TB)   # ragged last batch tile: OOB rows computed, dropped at writeback

    if n_chunks == 1:
        kernel = functools.partial(_group_sum_kernel_direct, g=g, sel_scale=sel_scale,
                                   out_scale=out_scale, precision=precision)
        grid = (nb,)
        in_specs = [pl.BlockSpec((TB, N), lambda i: (i, 0))]
        out_specs = pl.BlockSpec((TB, Kp), lambda i: (i, 0))
        scratch = []
        semantics = ("parallel",)
    else:
        kernel = functools.partial(_group_sum_kernel_chunked, g=g, n=N,
                                   sel_scale=sel_scale, out_scale=out_scale,
                                   precision=precision, ragged=ragged)
        grid = (nb, n_chunks)
        in_specs = [pl.BlockSpec((TB, NT), lambda i, j: (i, j))]
        out_specs = pl.BlockSpec((TB, Kp), lambda i, j: (i, 0))
        scratch = [pltpu.VMEM((TB, Kp), jnp.float32)]
        semantics = ("parallel", "arbitrary")

    out = pl.pallas_call(
        kernel,
        out_shape=jax.ShapeDtypeStruct((B, Kp), out_dtype),
        grid=grid,
        in_specs=in_specs,
        out_specs=out_specs,
        scratch_shapes=scratch,
        compiler_params=pltpu.CompilerParams(
            dimension_semantics=semantics,
            vmem_limit_bytes=vmem_limit,
        ),
    )(x2)

    return out[:, :k].reshape(*lead, k)


def group_sum_ref(x, k, tau=1.0, training=True):
    g = x.shape[-1] // k
    s = x.reshape(*x.shape[:-1], k, g).sum(-1)
    return s / tau if training else s


if __name__ == "__main__":
    key = jax.random.PRNGKey(0)
    # GroupSum has no learned parameters; only hyperparameters k and tau.
    k, tau = 10, 2.5
    # Leading dims are flattened by the wrapper; last dim divisible by k (g = 32).
    x = jax.random.uniform(key, (2, 8, 320), dtype=jnp.float32)

    # Training mode (divides by tau), single-chunk fast path.
    y = jax.block_until_ready(group_sum(x, k, tau=tau, training=True))
    y_ref = group_sum_ref(x, k, tau=tau, training=True)
    assert y.shape == (2, 8, k), y.shape
    assert jnp.allclose(y, y_ref, atol=1e-5, rtol=1e-5), float(jnp.max(jnp.abs(y - y_ref)))

    # Eval mode (no tau division) and a ragged, non-multiple-of-8 batch (no padding copy).
    x2 = jax.random.uniform(jax.random.PRNGKey(1), (3, 320), dtype=jnp.float32)
    y2 = jax.block_until_ready(group_sum(x2, k, tau=tau, training=False))
    y2_ref = group_sum_ref(x2, k, tau=tau, training=False)
    assert y2.shape == (3, k), y2.shape
    assert jnp.allclose(y2, y2_ref, atol=1e-5, rtol=1e-5), float(jnp.max(jnp.abs(y2 - y2_ref)))

    # Force the chunked + ragged-feature-chunk path (320 = 2*128 + 64) at small shape.
    y3 = jax.block_until_ready(group_sum(x, k, tau=tau, training=True, _tile_n=128))
    assert jnp.allclose(y3, y_ref, atol=1e-5, rtol=1e-5), float(jnp.max(jnp.abs(y3 - y_ref)))

    # bf16 opt-in compute path (f32 accumulation), looser tolerance.
    y4 = jax.block_until_ready(group_sum(x, k, tau=tau, training=True, use_bf16=True))
    assert jnp.allclose(y4, y_ref, atol=5e-2, rtol=5e-2), float(jnp.max(jnp.abs(y4 - y_ref)))

    print("KERNEL_OK")
</pallas_src>

<mosaic_0001>
module attributes {stable_mosaic.version = 11 : i64} {
  func.func @_group_sum_kernel_direct(%arg0: i32, %arg1: memref<8x320xf32, #tpu.memory_space<vmem>>, %arg2: memref<8x128xf32, #tpu.memory_space<vmem>>) attributes {dimension_semantics = [#tpu.dimension_semantics<parallel>], iteration_bounds = array<i64: 2>, scalar_prefetch = 0 : i64, scratch_operands = 0 : i64, tpu.core_type = #tpu.core_type<tc>, window_params = [{transform_indices = @transform_0, window_bounds = array<i64: 8, 320>}, {transform_indices = @transform_1, window_bounds = array<i64: 8, 128>}]} {
    %0 = tpu.iota {dimensions = array<i32: 0>} : vector<320x128xi32>
    %c0_i32 = arith.constant 0 : i32
    %1 = vector.broadcast %c0_i32 : i32 to vector<320x128xi32>
    %2 = arith.addi %0, %1 : vector<320x128xi32>
    %3 = tpu.iota {dimensions = array<i32: 1>} : vector<320x128xi32>
    %c32_i32 = arith.constant 32 : i32
    %4 = vector.broadcast %c32_i32 : i32 to vector<320x128xi32>
    %5 = arith.muli %3, %4 : vector<320x128xi32>
    %6 = arith.cmpi sge, %2, %5 : vector<320x128xi32>
    %c32_i32_0 = arith.constant 32 : i32
    %7 = vector.broadcast %c32_i32_0 : i32 to vector<320x128xi32>
    %8 = arith.addi %5, %7 : vector<320x128xi32>
    %9 = arith.cmpi slt, %2, %8 : vector<320x128xi32>
    %10 = arith.andi %6, %9 : vector<320x128xi1>
    %cst = arith.constant 4.000000e-01 : f32
    %cst_1 = arith.constant 0.000000e+00 : f32
    %11 = vector.broadcast %cst : f32 to vector<320x128xf32>
    %12 = vector.broadcast %cst_1 : f32 to vector<320x128xf32>
    %13 = arith.select %10, %11, %12 : vector<320x128xi1>, vector<320x128xf32>
    %c0 = arith.constant 0 : index
    %c0_2 = arith.constant 0 : index
    %14 = vector.load %arg1[%c0, %c0_2] : memref<8x320xf32, #tpu.memory_space<vmem>>, vector<8x320xf32>
    %cst_3 = arith.constant dense<0.000000e+00> : vector<8x128xf32>
    %15 = tpu.matmul %14, %13, %cst_3 {dimension_numbers = #tpu.dot_dimension_numbers<[1], [0], [0], [1], [0, 0, 1, 1], [], []>, precision = #tpu.contract_precision<fp32>} : vector<8x320xf32>, vector<320x128xf32>, vector<8x128xf32> -> vector<8x128xf32>
    %c0_4 = arith.constant 0 : index
    %c0_5 = arith.constant 0 : index
    %16 = vector.load %arg2[%c0_4, %c0_5] : memref<8x128xf32, #tpu.memory_space<vmem>>, vector<8x128xf32>
    tpu.vector_store %arg2[%c0_4, %c0_5], %15 {strides = array<i32>} : memref<8x128xf32, #tpu.memory_space<vmem>>, vector<8x128xf32>,
    return
  }
  func.func @transform_0(%arg0: i32) -> (i32, i32) {
    %c0_i32 = arith.constant 0 : i32
    %c0_i32_0 = arith.constant 0 : i32
    return %arg0, %c0_i32 : i32, i32
  }
  func.func @transform_1(%arg0: i32) -> (i32, i32) {
    %c0_i32 = arith.constant 0 : i32
    %c0_i32_0 = arith.constant 0 : i32
    return %arg0, %c0_i32 : i32, i32
  }
}

</mosaic_0001>

<llo_original>
// kernel: tpu_custom_call.1
$region0: #{tpu_custom_call.1}
  #allocation0 [shape = 'u32[]', space=smem, size = 0x4, offset = 0x4, fixed_abs, tag = 'smem constant byte address 0x4 - core index']
  #allocation1 [shape = 'u32[72,128]{1,0:T(1,128)}', space=vmem, size = 0x9000, scoped, tag = 'internal scratch']
  %s0 = inlined_call_operand.hbm [shape: f32[16,320], index: 0, kind: input, shape index: {}]
  %s1 = inlined_call_operand.hbm [shape: f32[16,128], index: 1, kind: output, shape index: {}]
  %s2 = sld [smem:[#allocation0]]
  $region41: #{tpu_custom_call.1} parent=0
    _
  %s4 = ssub.s32 1, %s2
  %s5 = scalar_select 0, %s4, %s2
  $region1: #{tpu_custom_call.1} parent=0
    #allocation2 [shape = 'u8[24576]{0}', space=vmem, size = 0x6000, scoped, tag = 'input window, operand 0']
    #allocation3 [shape = 's32[2]{0}', space=sflag, size = 0x8, scoped, tag = 'scoped memory for tpu_custom_call.1']
    #allocation4 [shape = 's32[2]{0}', space=sflag, size = 0x8, scoped, tag = 'scoped memory for tpu_custom_call.1']
    #allocation5 [shape = 'u8[8192]{0}', space=vmem, size = 0x2000, scoped, tag = 'output window, operand 0']
    %6 = vsyncpa [#allocation3], 0
    %s7 = scalar_lea.sflag [#allocation3], 1
    %8 = vsyncpa %s7, 0
    %9 = vsyncpa [#allocation4], 0
    %s10 = scalar_lea.sflag [#allocation4], 1
    %11 = vsyncpa %s10, 0
    loop: start=0, step=1, limit=4
    $region2: #{tpu_custom_call.1} parent=1 // loop_pre_header
      _
    $region3: #{tpu_custom_call.1} parent=1 // loop_header
      %s13 = sphi 0, %s17
      %p14 = scmp.ge.s32.totalorder %s13, 4
      %s23 = sphi 0, %s25
      %s26 = sphi 0, %s23
      %s27 = sphi 0, %s26
      %s43 = sphi 0, %s27
      %s49 = sphi 0, %s51
      %s52 = sphi 0, %s49
      %s53 = sphi 0, %s52
      %s69 = sphi 0, %s53
    $region4: #{tpu_custom_call.1} parent=1 // loop_header_branch
      %16 = sbr.rel (%p14) target = $region8
    $region5: #{tpu_custom_call.1} parent=1 // loop_body
      %s18 = ssub.s32 %s13, 1
      %s19 = ssub.s32 %s13, 2
      %s20 = sadd.s32 %s13, 1
      %s21 = ssub.s32 %s13, %s20
      %p22 = scmp.eq.s32.totalorder %s21, 0
      %s24 = sadd.s32 %s23, 1
      %s25 = scalar_select %p22, %s23, %s24
      %p28 = pneg %p22
      %p29 = scmp.eq.s32.totalorder %s13, 1
      %p30 = por %p28, %p29
      %p31 = scmp.ne.s32.totalorder %s23, %s26
      %p32 = scmp.eq.s32.totalorder %s13, 0
      %p33 = por %p31, %p32
      %p34 = scmp.ne.s32.totalorder %s23, %s26
      %p35 = scmp.eq.s32.totalorder %s18, 1
      %p36 = por %p34, %p35
      %p37 = scmp.ne.s32.totalorder %s26, %s27
      %p38 = scmp.eq.s32.totalorder %s18, 0
      %p39 = por %p37, %p38
      %p40 = scmp.ne.s32.totalorder %s26, %s27
      %p41 = scmp.eq.s32.totalorder %s19, 1
      %p42 = por %p40, %p41
      %p44 = scmp.ne.s32.totalorder %s27, %s43
      %p45 = scmp.eq.s32.totalorder %s19, 0
      %p46 = por %p44, %p45
      %s47 = ssub.s32 %s13, %s20
      %p48 = scmp.eq.s32.totalorder %s47, 0
      %s50 = sadd.s32 %s49, 1
      %s51 = scalar_select %p48, %s49, %s50
      %p54 = pneg %p48
      %p55 = scmp.eq.s32.totalorder %s13, 1
      %p56 = por %p54, %p55
      %p57 = scmp.ne.s32.totalorder %s49, %s52
      %p58 = scmp.eq.s32.totalorder %s13, 0
      %p59 = por %p57, %p58
      %p60 = scmp.ne.s32.totalorder %s49, %s52
      %p61 = scmp.eq.s32.totalorder %s18, 1
      %p62 = por %p60, %p61
      %p63 = scmp.ne.s32.totalorder %s52, %s53
      %p64 = scmp.eq.s32.totalorder %s18, 0
      %p65 = por %p63, %p64
      %p66 = scmp.ne.s32.totalorder %s52, %s53
      %p67 = scmp.eq.s32.totalorder %s19, 1
      %p68 = por %p66, %p67
      %p70 = scmp.ne.s32.totalorder %s53, %s69
      %p71 = scmp.eq.s32.totalorder %s19, 0
      %p72 = por %p70, %p71
      %p73 = scmp.le.s32.totalorder 1, %s13
      %p74 = scmp.lt.s32.totalorder %s13, 3
      %p75 = pnand %p73, %p74
      %p76 = pneg %p75
      // Predicated region
      $region9: #{tpu_custom_call.1} parent=5 // pred_check
        _
      $region10: #{tpu_custom_call.1} parent=5 // pred_check_branch
        %78 = sbr.rel (%p75) target = $region12
      $region11: #{tpu_custom_call.1} parent=5 // pred_region
        %s79 = ssub.s32 %s13, 1
      $region12: #{tpu_custom_call.1} parent=5 // pred_fallthru
        _
      %p80 = scmp.lt.s32.totalorder %s13, 2
      // Predicated region
      $region13: #{tpu_custom_call.1} parent=5 // pred_check
        %p81 = pneg %p80
      $region14: #{tpu_custom_call.1} parent=5 // pred_check_branch
        %83 = sbr.rel (%p81) target = $region16
      $region15: #{tpu_custom_call.1} parent=5 // pred_region
        // Predicated region
        $region17: #{tpu_custom_call.1} parent=15 // pred_check
          %p84 = pneg %p33
        $region18: #{tpu_custom_call.1} parent=15 // pred_check_branch
          %86 = sbr.rel (%p84) target = $region20
        $region19: #{tpu_custom_call.1} parent=15 // pred_region
          %s87 = sand.u32 %s23, 1
          %s88 = scalar_lea.sflag [#allocation3], %s87
          %s89 = sand.u32 %s23, 1
          %s90 = smul.addr %s89, 24
          %s91 = scalar_lea.vmem [#allocation2], %s90
          %93 = vsyncadd %s88, 0
          %s94 = smul.addr %s13, 3
          %s95 = smul.addr %s94, 8
          %s96 = scalar_lea.hbm %s0, %s95
          %s98 = sshll.u32 %s96, 4
          %s99 = int_to_ptr.hbm [resolvable:$true] %s98
          %s100 = sshll.u32 %s91, 4
          %s101 = int_to_ptr.vmem [resolvable:$true] %s100
          %103 = dma.hbm_to_vmem [thread:$0]  %s99, 384, %s101, %s88
        $region20: #{tpu_custom_call.1} parent=15 // pred_fallthru
          _
      $region16: #{tpu_custom_call.1} parent=5 // pred_fallthru
        _
      %p104 = scmp.le.s32.totalorder 1, %s13
      %p105 = scmp.lt.s32.totalorder %s13, 3
      %p106 = pnand %p104, %p105
      %p107 = pneg %p106
      // Predicated region
      $region21: #{tpu_custom_call.1} parent=5 // pred_check
        _
      $region22: #{tpu_custom_call.1} parent=5 // pred_check_branch
        %109 = sbr.rel (%p106) target = $region24
      $region23: #{tpu_custom_call.1} parent=5 // pred_region
        %s110 = ssub.s32 %s13, 1
        %s111 = sand.u32 %s26, 1
        %s112 = scalar_lea.sflag [#allocation3], %s111
        %s113 = sand.u32 %s26, 1
        %s114 = smul.addr %s113, 24
        %s115 = scalar_lea.vmem [#allocation2], %s114
        // Predicated region
        $region25: #{tpu_custom_call.1} parent=23 // pred_check
          %p116 = pneg %p39
        $region26: #{tpu_custom_call.1} parent=23 // pred_check_branch
          %118 = sbr.rel (%p116) target = $region28
        $region27: #{tpu_custom_call.1} parent=23 // pred_region
          %120 = dma.done %s112, 384
        $region28: #{tpu_custom_call.1} parent=23 // pred_fallthru
          _
        %s121 = sand.u32 %s26, 1
        %s122 = scalar_lea.sflag [#allocation3], %s121
        %s123 = sand.u32 %s26, 1
        %s124 = smul.addr %s123, 24
        %s125 = scalar_lea.vmem [#allocation2], %s124
        %p126 = pneg %p39
        %p127 = pneg %p36
        %p128 = pneg %p65
        %p129 = pneg %p62
        %s130 = sand.u32 %s52, 1
        %s131 = scalar_lea.sflag [#allocation4], %s130
        %s132 = sand.u32 %s52, 1
        %s133 = smul.addr %s132, 8
        %s134 = scalar_lea.vmem [#allocation5], %s133
        %v135 = vlaneseq
        %v136 = vshrl.u32 %v135, 7
        %v137 = vadd.s32 %v136, 8
        %v138 = vadd.s32 %v136, 16
        %v139 = vadd.s32 %v136, 24
        %v140 = vadd.s32 %v136, 32
        %v141 = vadd.s32 %v136, 40
        %v142 = vadd.s32 %v136, 48
        %v143 = vadd.s32 %v136, 56
        %v144 = vadd.s32 %v136, 64
        %v145 = vadd.s32 %v136, 72
        %v146 = vadd.s32 %v136, 80
        %v147 = vadd.s32 %v136, 88
        %v148 = vadd.s32 %v136, 96
        %v149 = vadd.s32 %v136, 104
        %v150 = vadd.s32 %v136, 112
        %v151 = vadd.s32 %v136, 120
        %v152 = vadd.s32 %v136, 128
        %v153 = vadd.s32 %v136, 136
        %v154 = vadd.s32 %v136, 144
        %v155 = vadd.s32 %v136, 152
        %v156 = vadd.s32 %v136, 160
        %v157 = vadd.s32 %v136, 168
        %v158 = vadd.s32 %v136, 176
        %v159 = vadd.s32 %v136, 184
        %v160 = vadd.s32 %v136, 192
        %v161 = vadd.s32 %v136, 200
        %v162 = vadd.s32 %v136, 208
        %v163 = vadd.s32 %v136, 216
        %v164 = vadd.s32 %v136, 224
        %v165 = vadd.s32 %v136, 232
        %v166 = vadd.s32 %v136, 240
        %v167 = vadd.s32 %v136, 248
        %v168 = vadd.s32 %v136, 256
        %v169 = vadd.s32 %v136, 264
        %v170 = vadd.s32 %v136, 272
        %v171 = vadd.s32 %v136, 280
        %v172 = vadd.s32 %v136, 288
        %v173 = vadd.s32 %v136, 296
        %v174 = vadd.s32 %v136, 304
        %v175 = vadd.s32 %v136, 312
        %v176 = vlaneseq
        %v177 = vand.u32 %v176, 127
        %v178 = vmul.u32 %v177, 32
        %vm179 = vcmp.ge.s32.totalorder %v136, %v178
        %vm180 = vcmp.ge.s32.totalorder %v137, %v178
        %vm181 = vcmp.ge.s32.totalorder %v138, %v178
        %vm182 = vcmp.ge.s32.totalorder %v139, %v178
        %vm183 = vcmp.ge.s32.totalorder %v140, %v178
        %vm184 = vcmp.ge.s32.totalorder %v141, %v178
        %vm185 = vcmp.ge.s32.totalorder %v142, %v178
        %vm186 = vcmp.ge.s32.totalorder %v143, %v178
        %vm187 = vcmp.ge.s32.totalorder %v144, %v178
        %vm188 = vcmp.ge.s32.totalorder %v145, %v178
        %vm189 = vcmp.ge.s32.totalorder %v146, %v178
        %vm190 = vcmp.ge.s32.totalorder %v147, %v178
        %vm191 = vcmp.ge.s32.totalorder %v148, %v178
        %vm192 = vcmp.ge.s32.totalorder %v149, %v178
        %vm193 = vcmp.ge.s32.totalorder %v150, %v178
        %vm194 = vcmp.ge.s32.totalorder %v151, %v178
        %vm195 = vcmp.ge.s32.totalorder %v152, %v178
        %vm196 = vcmp.ge.s32.totalorder %v153, %v178
        %vm197 = vcmp.ge.s32.totalorder %v154, %v178
        %vm198 = vcmp.ge.s32.totalorder %v155, %v178
        %vm199 = vcmp.ge.s32.totalorder %v156, %v178
        %vm200 = vcmp.ge.s32.totalorder %v157, %v178
        %vm201 = vcmp.ge.s32.totalorder %v158, %v178
        %vm202 = vcmp.ge.s32.totalorder %v159, %v178
        %vm203 = vcmp.ge.s32.totalorder %v160, %v178
        %vm204 = vcmp.ge.s32.totalorder %v161, %v178
        %vm205 = vcmp.ge.s32.totalorder %v162, %v178
        %vm206 = vcmp.ge.s32.totalorder %v163, %v178
        %vm207 = vcmp.ge.s32.totalorder %v164, %v178
        %vm208 = vcmp.ge.s32.totalorder %v165, %v178
        %vm209 = vcmp.ge.s32.totalorder %v166, %v178
        %vm210 = vcmp.ge.s32.totalorder %v167, %v178
        %vm211 = vcmp.ge.s32.totalorder %v168, %v178
        %vm212 = vcmp.ge.s32.totalorder %v169, %v178
        %vm213 = vcmp.ge.s32.totalorder %v170, %v178
        %vm214 = vcmp.ge.s32.totalorder %v171, %v178
        %vm215 = vcmp.ge.s32.totalorder %v172, %v178
        %vm216 = vcmp.ge.s32.totalorder %v173, %v178
        %vm217 = vcmp.ge.s32.totalorder %v174, %v178
        %vm218 = vcmp.ge.s32.totalorder %v175, %v178
        %v219 = vadd.s32 %v178, 32
        %vm220 = vcmp.lt.s32.totalorder %v136, %v219
        %vm221 = vcmp.lt.s32.totalorder %v137, %v219
        %vm222 = vcmp.lt.s32.totalorder %v138, %v219
        %vm223 = vcmp.lt.s32.totalorder %v139, %v219
        %vm224 = vcmp.lt.s32.totalorder %v140, %v219
        %vm225 = vcmp.lt.s32.totalorder %v141, %v219
        %vm226 = vcmp.lt.s32.totalorder %v142, %v219
        %vm227 = vcmp.lt.s32.totalorder %v143, %v219
        %vm228 = vcmp.lt.s32.totalorder %v144, %v219
        %vm229 = vcmp.lt.s32.totalorder %v145, %v219
        %vm230 = vcmp.lt.s32.totalorder %v146, %v219
        %vm231 = vcmp.lt.s32.totalorder %v147, %v219
        %vm232 = vcmp.lt.s32.totalorder %v148, %v219
        %vm233 = vcmp.lt.s32.totalorder %v149, %v219
        %vm234 = vcmp.lt.s32.totalorder %v150, %v219
        %vm235 = vcmp.lt.s32.totalorder %v151, %v219
        %vm236 = vcmp.lt.s32.totalorder %v152, %v219
        %vm237 = vcmp.lt.s32.totalorder %v153, %v219
        %vm238 = vcmp.lt.s32.totalorder %v154, %v219
        %vm239 = vcmp.lt.s32.totalorder %v155, %v219
        %vm240 = vcmp.lt.s32.totalorder %v156, %v219
        %vm241 = vcmp.lt.s32.totalorder %v157, %v219
        %vm242 = vcmp.lt.s32.totalorder %v158, %v219
        %vm243 = vcmp.lt.s32.totalorder %v159, %v219
        %vm244 = vcmp.lt.s32.totalorder %v160, %v219
        %vm245 = vcmp.lt.s32.totalorder %v161, %v219
        %vm246 = vcmp.lt.s32.totalorder %v162, %v219
        %vm247 = vcmp.lt.s32.totalorder %v163, %v219
        %vm248 = vcmp.lt.s32.totalorder %v164, %v219
        %vm249 = vcmp.lt.s32.totalorder %v165, %v219
        %vm250 = vcmp.lt.s32.totalorder %v166, %v219
        %vm251 = vcmp.lt.s32.totalorder %v167, %v219
        %vm252 = vcmp.lt.s32.totalorder %v168, %v219
        %vm253 = vcmp.lt.s32.totalorder %v169, %v219
        %vm254 = vcmp.lt.s32.totalorder %v170, %v219
        %vm255 = vcmp.lt.s32.totalorder %v171, %v219
        %vm256 = vcmp.lt.s32.totalorder %v172, %v219
        %vm257 = vcmp.lt.s32.totalorder %v173, %v219
        %vm258 = vcmp.lt.s32.totalorder %v174, %v219
        %vm259 = vcmp.lt.s32.totalorder %v175, %v219
        %vm260 = vmand %vm179, %vm220
        %vm261 = vmand %vm180, %vm221
        %vm262 = vmand %vm181, %vm222
        %vm263 = vmand %vm182, %vm223
        %vm264 = vmand %vm183, %vm224
        %vm265 = vmand %vm184, %vm225
        %vm266 = vmand %vm185, %vm226
        %vm267 = vmand %vm186, %vm227
        %vm268 = vmand %vm187, %vm228
        %vm269 = vmand %vm188, %vm229
        %vm270 = vmand %vm189, %vm230
        %vm271 = vmand %vm190, %vm231
        %vm272 = vmand %vm191, %vm232
        %vm273 = vmand %vm192, %vm233
        %vm274 = vmand %vm193, %vm234
        %vm275 = vmand %vm194, %vm235
        %vm276 = vmand %vm195, %vm236
        %vm277 = vmand %vm196, %vm237
        %vm278 = vmand %vm197, %vm238
        %vm279 = vmand %vm198, %vm239
        %vm280 = vmand %vm199, %vm240
        %vm281 = vmand %vm200, %vm241
        %vm282 = vmand %vm201, %vm242
        %vm283 = vmand %vm202, %vm243
        %vm284 = vmand %vm203, %vm244
        %vm285 = vmand %vm204, %vm245
        %vm286 = vmand %vm205, %vm246
        %vm287 = vmand %vm206, %vm247
        %vm288 = vmand %vm207, %vm248
        %vm289 = vmand %vm208, %vm249
        %vm290 = vmand %vm209, %vm250
        %vm291 = vmand %vm210, %vm251
        %vm292 = vmand %vm211, %vm252
        %vm293 = vmand %vm212, %vm253
        %vm294 = vmand %vm213, %vm254
        %vm295 = vmand %vm214, %vm255
        %vm296 = vmand %vm215, %vm256
        %vm297 = vmand %vm216, %vm257
        %vm298 = vmand %vm217, %vm258
        %vm299 = vmand %vm218, %vm259
        %v300 = vsel %vm260, 0.4, 0.0
        %v301 = vsel %vm261, 0.4, 0.0
        %v302 = vsel %vm262, 0.4, 0.0
        %v303 = vsel %vm263, 0.4, 0.0
        %v304 = vsel %vm264, 0.4, 0.0
        %v305 = vsel %vm265, 0.4, 0.0
        %v306 = vsel %vm266, 0.4, 0.0
        %v307 = vsel %vm267, 0.4, 0.0
        %v308 = vsel %vm268, 0.4, 0.0
        %v309 = vsel %vm269, 0.4, 0.0
        %v310 = vsel %vm270, 0.4, 0.0
        %v311 = vsel %vm271, 0.4, 0.0
        %v312 = vsel %vm272, 0.4, 0.0
        %v313 = vsel %vm273, 0.4, 0.0
        %v314 = vsel %vm274, 0.4, 0.0
        %v315 = vsel %vm275, 0.4, 0.0
        %v316 = vsel %vm276, 0.4, 0.0
        %v317 = vsel %vm277, 0.4, 0.0
        %v318 = vsel %vm278, 0.4, 0.0
        %v319 = vsel %vm279, 0.4, 0.0
        %v320 = vsel %vm280, 0.4, 0.0
        %v321 = vsel %vm281, 0.4, 0.0
        %v322 = vsel %vm282, 0.4, 0.0
        %v323 = vsel %vm283, 0.4, 0.0
        %v324 = vsel %vm284, 0.4, 0.0
        %v325 = vsel %vm285, 0.4, 0.0
        %v326 = vsel %vm286, 0.4, 0.0
        %v327 = vsel %vm287, 0.4, 0.0
        %v328 = vsel %vm288, 0.4, 0.0
        %v329 = vsel %vm289, 0.4, 0.0
        %v330 = vsel %vm290, 0.4, 0.0
        %v331 = vsel %vm291, 0.4, 0.0
        %v332 = vsel %vm292, 0.4, 0.0
        %v333 = vsel %vm293, 0.4, 0.0
        %v334 = vsel %vm294, 0.4, 0.0
        %v335 = vsel %vm295, 0.4, 0.0
        %v336 = vsel %vm296, 0.4, 0.0
        %v337 = vsel %vm297, 0.4, 0.0
        %v338 = vsel %vm298, 0.4, 0.0
        %v339 = vsel %vm299, 0.4, 0.0
        %v340 = vld [vmem:[%s115] sm:$0xff]
        %v341 = vld [vmem:[%s115 + $0x8] sm:$0xff]
        %v342 = vld [vmem:[%s115 + $0x10] sm:$0xff]
        %vm343 = vcmask 523264
        %v345 = vsel %vm343, %v342, 0
        %v347 = vand.u32 %v315, 4294901760
        %348 = vmatpush.msra.mxu0 %v347
        %v349 = vand.u32 %v314, 4294901760
        %350 = vmatpush.msra.mxu0 %v349
        %v351 = vand.u32 %v313, 4294901760
        %352 = vmatpush.msra.mxu0 %v351
        %v353 = vand.u32 %v312, 4294901760
        %354 = vmatpush.msra.mxu0 %v353
        %v355 = vand.u32 %v311, 4294901760
        %356 = vmatpush.msra.mxu0 %v355
        %v357 = vand.u32 %v310, 4294901760
        %358 = vmatpush.msra.mxu0 %v357
        %v359 = vand.u32 %v309, 4294901760
        %360 = vmatpush.msra.mxu0 %v359
        %v361 = vand.u32 %v308, 4294901760
        %362 = vmatpush.msra.mxu0 %v361
        %v363 = vand.u32 %v307, 4294901760
        %364 = vmatpush.msra.mxu0 %v363
        %v365 = vand.u32 %v306, 4294901760
        %366 = vmatpush.msra.mxu0 %v365
        %v367 = vand.u32 %v305, 4294901760
        %368 = vmatpush.msra.mxu0 %v367
        %v369 = vand.u32 %v304, 4294901760
        %370 = vmatpush.msra.mxu0 %v369
        %v371 = vand.u32 %v303, 4294901760
        %372 = vmatpush.msra.mxu0 %v371
        %v373 = vand.u32 %v302, 4294901760
        %374 = vmatpush.msra.mxu0 %v373
        %v375 = vand.u32 %v301, 4294901760
        %376 = vmatpush.msra.mxu0 %v375
        %v377 = vand.u32 %v300, 4294901760
        %378 = vmatpush.msra.mxu0 %v377
        %v379 = vand.u32 %v340, 4294901760
        %v380 = vsub.f32 %v340, %v379
        %v381 = vand.u32 %v380, 4294901760
        %v382 = vsub.f32 %v380, %v381
        %v383 = vand.u32 %v382, 4294901760
        %384 = vmatmul.f32.gmra.mxu0 %v383
        %v385 = vpop.f32.mrf.mxu0
        %v386 = vadd.f32 0.0, %v385
        %387 = vdwg.mxu0
        %v388 = vand.u32 %v315, 4294901760
        %v389 = vsub.f32 %v315, %v388
        %v390 = vand.u32 %v389, 4294901760
        %v391 = vsub.f32 %v389, %v390
        %v392 = vand.u32 %v391, 4294901760
        %393 = vmatpush.msra.mxu0 %v392
        %v394 = vand.u32 %v314, 4294901760
        %v395 = vsub.f32 %v314, %v394
        %v396 = vand.u32 %v395, 4294901760
        %v397 = vsub.f32 %v395, %v396
        %v398 = vand.u32 %v397, 4294901760
        %399 = vmatpush.msra.mxu0 %v398
        %v400 = vand.u32 %v313, 4294901760
        %v401 = vsub.f32 %v313, %v400
        %v402 = vand.u32 %v401, 4294901760
        %v403 = vsub.f32 %v401, %v402
        %v404 = vand.u32 %v403, 4294901760
        %405 = vmatpush.msra.mxu0 %v404
        %v406 = vand.u32 %v312, 4294901760
        %v407 = vsub.f32 %v312, %v406
        %v408 = vand.u32 %v407, 4294901760
        %v409 = vsub.f32 %v407, %v408
        %v410 = vand.u32 %v409, 4294901760
        %411 = vmatpush.msra.mxu0 %v410
        %v412 = vand.u32 %v311, 4294901760
        %v413 = vsub.f32 %v311, %v412
        %v414 = vand.u32 %v413, 4294901760
        %v415 = vsub.f32 %v413, %v414
        %v416 = vand.u32 %v415, 4294901760
        %417 = vmatpush.msra.mxu0 %v416
        %v418 = vand.u32 %v310, 4294901760
        %v419 = vsub.f32 %v310, %v418
        %v420 = vand.u32 %v419, 4294901760
        %v421 = vsub.f32 %v419, %v420
        %v422 = vand.u32 %v421, 4294901760
        %423 = vmatpush.msra.mxu0 %v422
        %v424 = vand.u32 %v309, 4294901760
        %v425 = vsub.f32 %v309, %v424
        %v426 = vand.u32 %v425, 4294901760
        %v427 = vsub.f32 %v425, %v426
        %v428 = vand.u32 %v427, 4294901760
        %429 = vmatpush.msra.mxu0 %v428
        %v430 = vand.u32 %v308, 4294901760
        %v431 = vsub.f32 %v308, %v430
        %v432 = vand.u32 %v431, 4294901760
        %v433 = vsub.f32 %v431, %v432
        %v434 = vand.u32 %v433, 4294901760
        %435 = vmatpush.msra.mxu0 %v434
        %v436 = vand.u32 %v307, 4294901760
        %v437 = vsub.f32 %v307, %v436
        %v438 = vand.u32 %v437, 4294901760
        %v439 = vsub.f32 %v437, %v438
        %v440 = vand.u32 %v439, 4294901760
        %441 = vmatpush.msra.mxu0 %v440
        %v442 = vand.u32 %v306, 4294901760
        %v443 = vsub.f32 %v306, %v442
        %v444 = vand.u32 %v443, 4294901760
        %v445 = vsub.f32 %v443, %v444
        %v446 = vand.u32 %v445, 4294901760
        %447 = vmatpush.msra.mxu0 %v446
        %v448 = vand.u32 %v305, 4294901760
        %v449 = vsub.f32 %v305, %v448
        %v450 = vand.u32 %v449, 4294901760
        %v451 = vsub.f32 %v449, %v450
        %v452 = vand.u32 %v451, 4294901760
        %453 = vmatpush.msra.mxu0 %v452
        %v454 = vand.u32 %v304, 4294901760
        %v455 = vsub.f32 %v304, %v454
        %v456 = vand.u32 %v455, 4294901760
        %v457 = vsub.f32 %v455, %v456
        %v458 = vand.u32 %v457, 4294901760
        %459 = vmatpush.msra.mxu0 %v458
        %v460 = vand.u32 %v303, 4294901760
        %v461 = vsub.f32 %v303, %v460
        %v462 = vand.u32 %v461, 4294901760
        %v463 = vsub.f32 %v461, %v462
        %v464 = vand.u32 %v463, 4294901760
        %465 = vmatpush.msra.mxu0 %v464
        %v466 = vand.u32 %v302, 4294901760
        %v467 = vsub.f32 %v302, %v466
        %v468 = vand.u32 %v467, 4294901760
        %v469 = vsub.f32 %v467, %v468
        %v470 = vand.u32 %v469, 4294901760
        %471 = vmatpush.msra.mxu0 %v470
        %v472 = vand.u32 %v301, 4294901760
        %v473 = vsub.f32 %v301, %v472
        %v474 = vand.u32 %v473, 4294901760
        %v475 = vsub.f32 %v473, %v474
        %v476 = vand.u32 %v475, 4294901760
        %477 = vmatpush.msra.mxu0 %v476
        %v478 = vand.u32 %v300, 4294901760
        %v479 = vsub.f32 %v300, %v478
        %v480 = vand.u32 %v479, 4294901760
        %v481 = vsub.f32 %v479, %v480
        %v482 = vand.u32 %v481, 4294901760
        %483 = vmatpush.msra.mxu0 %v482
        %v484 = vand.u32 %v340, 4294901760
        %485 = vmatmul.f32.gmra.mxu0 %v484
        %v486 = vpop.f32.mrf.mxu0
        %v487 = vadd.f32 %v386, %v486
        %488 = vdwg.mxu0
        %v489 = vand.u32 %v315, 4294901760
        %v490 = vsub.f32 %v315, %v489
        %491 = vmatpush.msra.mxu0 %v490
        %v492 = vand.u32 %v314, 4294901760
        %v493 = vsub.f32 %v314, %v492
        %494 = vmatpush.msra.mxu0 %v493
        %v495 = vand.u32 %v313, 4294901760
        %v496 = vsub.f32 %v313, %v495
        %497 = vmatpush.msra.mxu0 %v496
        %v498 = vand.u32 %v312, 4294901760
        %v499 = vsub.f32 %v312, %v498
        %500 = vmatpush.msra.mxu0 %v499
        %v501 = vand.u32 %v311, 4294901760
        %v502 = vsub.f32 %v311, %v501
        %503 = vmatpush.msra.mxu0 %v502
        %v504 = vand.u32 %v310, 4294901760
        %v505 = vsub.f32 %v310, %v504
        %506 = vmatpush.msra.mxu0 %v505
        %v507 = vand.u32 %v309, 4294901760
        %v508 = vsub.f32 %v309, %v507
        %509 = vmatpush.msra.mxu0 %v508
        %v510 = vand.u32 %v308, 4294901760
        %v511 = vsub.f32 %v308, %v510
        %512 = vmatpush.msra.mxu0 %v511
        %v513 = vand.u32 %v307, 4294901760
        %v514 = vsub.f32 %v307, %v513
        %515 = vmatpush.msra.mxu0 %v514
        %v516 = vand.u32 %v306, 4294901760
        %v517 = vsub.f32 %v306, %v516
        %518 = vmatpush.msra.mxu0 %v517
        %v519 = vand.u32 %v305, 4294901760
        %v520 = vsub.f32 %v305, %v519
        %521 = vmatpush.msra.mxu0 %v520
        %v522 = vand.u32 %v304, 4294901760
        %v523 = vsub.f32 %v304, %v522
        %524 = vmatpush.msra.mxu0 %v523
        %v525 = vand.u32 %v303, 4294901760
        %v526 = vsub.f32 %v303, %v525
        %527 = vmatpush.msra.mxu0 %v526
        %v528 = vand.u32 %v302, 4294901760
        %v529 = vsub.f32 %v302, %v528
        %530 = vmatpush.msra.mxu0 %v529
        %v531 = vand.u32 %v301, 4294901760
        %v532 = vsub.f32 %v301, %v531
        %533 = vmatpush.msra.mxu0 %v532
        %v534 = vand.u32 %v300, 4294901760
        %v535 = vsub.f32 %v300, %v534
        %536 = vmatpush.msra.mxu0 %v535
        %v537 = vand.u32 %v340, 4294901760
        %v538 = vsub.f32 %v340, %v537
        %539 = vmatmul.f32.gmra.mxu0 %v538
        %v540 = vpop.f32.mrf.mxu0
        %v541 = vadd.f32 %v487, %v540
        %542 = vdwg.mxu0
        %v543 = vand.u32 %v315, 4294901760
        %544 = vmatpush.msra.mxu0 %v543
        %v545 = vand.u32 %v314, 4294901760
        %546 = vmatpush.msra.mxu0 %v545
        %v547 = vand.u32 %v313, 4294901760
        %548 = vmatpush.msra.mxu0 %v547
        %v549 = vand.u32 %v312, 4294901760
        %550 = vmatpush.msra.mxu0 %v549
        %v551 = vand.u32 %v311, 4294901760
        %552 = vmatpush.msra.mxu0 %v551
        %v553 = vand.u32 %v310, 4294901760
        %554 = vmatpush.msra.mxu0 %v553
        %v555 = vand.u32 %v309, 4294901760
        %556 = vmatpush.msra.mxu0 %v555
        %v557 = vand.u32 %v308, 4294901760
        %558 = vmatpush.msra.mxu0 %v557
        %v559 = vand.u32 %v307, 4294901760
        %560 = vmatpush.msra.mxu0 %v559
        %v561 = vand.u32 %v306, 4294901760
        %562 = vmatpush.msra.mxu0 %v561
        %v563 = vand.u32 %v305, 4294901760
        %564 = vmatpush.msra.mxu0 %v563
        %v565 = vand.u32 %v304, 4294901760
        %566 = vmatpush.msra.mxu0 %v565
        %v567 = vand.u32 %v303, 4294901760
        %568 = vmatpush.msra.mxu0 %v567
        %v569 = vand.u32 %v302, 4294901760
        %570 = vmatpush.msra.mxu0 %v569
        %v571 = vand.u32 %v301, 4294901760
        %572 = vmatpush.msra.mxu0 %v571
        %v573 = vand.u32 %v300, 4294901760
        %574 = vmatpush.msra.mxu0 %v573
        %v575 = vand.u32 %v340, 4294901760
        %v576 = vsub.f32 %v340, %v575
        %v577 = vand.u32 %v576, 4294901760
        %578 = vmatmul.f32.gmra.mxu0 %v577
        %v579 = vpop.f32.mrf.mxu0
        %v580 = vadd.f32 %v541, %v579
        %581 = vdwg.mxu0
        %v582 = vand.u32 %v315, 4294901760
        %v583 = vsub.f32 %v315, %v582
        %v584 = vand.u32 %v583, 4294901760
        %585 = vmatpush.msra.mxu0 %v584
        %v586 = vand.u32 %v314, 4294901760
        %v587 = vsub.f32 %v314, %v586
        %v588 = vand.u32 %v587, 4294901760
        %589 = vmatpush.msra.mxu0 %v588
        %v590 = vand.u32 %v313, 4294901760
        %v591 = vsub.f32 %v313, %v590
        %v592 = vand.u32 %v591, 4294901760
        %593 = vmatpush.msra.mxu0 %v592
        %v594 = vand.u32 %v312, 4294901760
        %v595 = vsub.f32 %v312, %v594
        %v596 = vand.u32 %v595, 4294901760
        %597 = vmatpush.msra.mxu0 %v596
        %v598 = vand.u32 %v311, 4294901760
        %v599 = vsub.f32 %v311, %v598
        %v600 = vand.u32 %v599, 4294901760
        %601 = vmatpush.msra.mxu0 %v600
        %v602 = vand.u32 %v310, 4294901760
        %v603 = vsub.f32 %v310, %v602
        %v604 = vand.u32 %v603, 4294901760
        %605 = vmatpush.msra.mxu0 %v604
        %v606 = vand.u32 %v309, 4294901760
        %v607 = vsub.f32 %v309, %v606
        %v608 = vand.u32 %v607, 4294901760
        %609 = vmatpush.msra.mxu0 %v608
        %v610 = vand.u32 %v308, 4294901760
        %v611 = vsub.f32 %v308, %v610
        %v612 = vand.u32 %v611, 4294901760
        %613 = vmatpush.msra.mxu0 %v612
        %v614 = vand.u32 %v307, 4294901760
        %v615 = vsub.f32 %v307, %v614
        %v616 = vand.u32 %v615, 4294901760
        %617 = vmatpush.msra.mxu0 %v616
        %v618 = vand.u32 %v306, 4294901760
        %v619 = vsub.f32 %v306, %v618
        %v620 = vand.u32 %v619, 4294901760
        %621 = vmatpush.msra.mxu0 %v620
        %v622 = vand.u32 %v305, 4294901760
        %v623 = vsub.f32 %v305, %v622
        %v624 = vand.u32 %v623, 4294901760
        %625 = vmatpush.msra.mxu0 %v624
        %v626 = vand.u32 %v304, 4294901760
        %v627 = vsub.f32 %v304, %v626
        %v628 = vand.u32 %v627, 4294901760
        %629 = vmatpush.msra.mxu0 %v628
        %v630 = vand.u32 %v303, 4294901760
        %v631 = vsub.f32 %v303, %v630
        %v632 = vand.u32 %v631, 4294901760
        %633 = vmatpush.msra.mxu0 %v632
        %v634 = vand.u32 %v302, 4294901760
        %v635 = vsub.f32 %v302, %v634
        %v636 = vand.u32 %v635, 4294901760
        %637 = vmatpush.msra.mxu0 %v636
        %v638 = vand.u32 %v301, 4294901760
        %v639 = vsub.f32 %v301, %v638
        %v640 = vand.u32 %v639, 4294901760
        %641 = vmatpush.msra.mxu0 %v640
        %v642 = vand.u32 %v300, 4294901760
        %v643 = vsub.f32 %v300, %v642
        %v644 = vand.u32 %v643, 4294901760
        %645 = vmatpush.msra.mxu0 %v644
        %v646 = vand.u32 %v340, 4294901760
        %647 = vmatmul.f32.gmra.mxu0 %v646
        %v648 = vpop.f32.mrf.mxu0
        %v649 = vadd.f32 %v580, %v648
        %650 = vdwg.mxu0
        %v651 = vand.u32 %v315, 4294901760
        %652 = vmatpush.msra.mxu0 %v651
        %v653 = vand.u32 %v314, 4294901760
        %654 = vmatpush.msra.mxu0 %v653
        %v655 = vand.u32 %v313, 4294901760
        %656 = vmatpush.msra.mxu0 %v655
        %v657 = vand.u32 %v312, 4294901760
        %658 = vmatpush.msra.mxu0 %v657
        %v659 = vand.u32 %v311, 4294901760
        %660 = vmatpush.msra.mxu0 %v659
        %v661 = vand.u32 %v310, 4294901760
        %662 = vmatpush.msra.mxu0 %v661
        %v663 = vand.u32 %v309, 4294901760
        %664 = vmatpush.msra.mxu0 %v663
        %v665 = vand.u32 %v308, 4294901760
        %666 = vmatpush.msra.mxu0 %v665
        %v667 = vand.u32 %v307, 4294901760
        %668 = vmatpush.msra.mxu0 %v667
        %v669 = vand.u32 %v306, 4294901760
        %670 = vmatpush.msra.mxu0 %v669
        %v671 = vand.u32 %v305, 4294901760
        %672 = vmatpush.msra.mxu0 %v671
        %v673 = vand.u32 %v304, 4294901760
        %674 = vmatpush.msra.mxu0 %v673
        %v675 = vand.u32 %v303, 4294901760
        %676 = vmatpush.msra.mxu0 %v675
        %v677 = vand.u32 %v302, 4294901760
        %678 = vmatpush.msra.mxu0 %v677
        %v679 = vand.u32 %v301, 4294901760
        %680 = vmatpush.msra.mxu0 %v679
        %v681 = vand.u32 %v300, 4294901760
        %682 = vmatpush.msra.mxu0 %v681
        %v683 = vand.u32 %v340, 4294901760
        %684 = vmatmul.f32.gmra.mxu0 %v683
        %v685 = vpop.f32.mrf.mxu0
        %v686 = vadd.f32 %v649, %v685
        %687 = vdwg.mxu0
        %v688 = vand.u32 %v331, 4294901760
        %689 = vmatpush.msra.mxu0 %v688
        %v690 = vand.u32 %v330, 4294901760
        %691 = vmatpush.msra.mxu0 %v690
        %v692 = vand.u32 %v329, 4294901760
        %693 = vmatpush.msra.mxu0 %v692
        %v694 = vand.u32 %v328, 4294901760
        %695 = vmatpush.msra.mxu0 %v694
        %v696 = vand.u32 %v327, 4294901760
        %697 = vmatpush.msra.mxu0 %v696
        %v698 = vand.u32 %v326, 4294901760
        %699 = vmatpush.msra.mxu0 %v698
        %v700 = vand.u32 %v325, 4294901760
        %701 = vmatpush.msra.mxu0 %v700
        %v702 = vand.u32 %v324, 4294901760
        %703 = vmatpush.msra.mxu0 %v702
        %v704 = vand.u32 %v323, 4294901760
        %705 = vmatpush.msra.mxu0 %v704
        %v706 = vand.u32 %v322, 4294901760
        %707 = vmatpush.msra.mxu0 %v706
        %v708 = vand.u32 %v321, 4294901760
        %709 = vmatpush.msra.mxu0 %v708
        %v710 = vand.u32 %v320, 4294901760
        %711 = vmatpush.msra.mxu0 %v710
        %v712 = vand.u32 %v319, 4294901760
        %713 = vmatpush.msra.mxu0 %v712
        %v714 = vand.u32 %v318, 4294901760
        %715 = vmatpush.msra.mxu0 %v714
        %v716 = vand.u32 %v317, 4294901760
        %717 = vmatpush.msra.mxu0 %v716
        %v718 = vand.u32 %v316, 4294901760
        %719 = vmatpush.msra.mxu0 %v718
        %v720 = vand.u32 %v341, 4294901760
        %v721 = vsub.f32 %v341, %v720
        %v722 = vand.u32 %v721, 4294901760
        %v723 = vsub.f32 %v721, %v722
        %v724 = vand.u32 %v723, 4294901760
        %725 = vmatmul.f32.gmra.mxu0 %v724
        %v726 = vpop.f32.mrf.mxu0
        %v727 = vadd.f32 %v686, %v726
        %728 = vdwg.mxu0
        %v729 = vand.u32 %v331, 4294901760
        %v730 = vsub.f32 %v331, %v729
        %v731 = vand.u32 %v730, 4294901760
        %v732 = vsub.f32 %v730, %v731
        %v733 = vand.u32 %v732, 4294901760
        %734 = vmatpush.msra.mxu0 %v733
        %v735 = vand.u32 %v330, 4294901760
        %v736 = vsub.f32 %v330, %v735
        %v737 = vand.u32 %v736, 4294901760
        %v738 = vsub.f32 %v736, %v737
        %v739 = vand.u32 %v738, 4294901760
        %740 = vmatpush.msra.mxu0 %v739
        %v741 = vand.u32 %v329, 4294901760
        %v742 = vsub.f32 %v329, %v741
        %v743 = vand.u32 %v742, 4294901760
        %v744 = vsub.f32 %v742, %v743
        %v745 = vand.u32 %v744, 4294901760
        %746 = vmatpush.msra.mxu0 %v745
        %v747 = vand.u32 %v328, 4294901760
        %v748 = vsub.f32 %v328, %v747
        %v749 = vand.u32 %v748, 4294901760
        %v750 = vsub.f32 %v748, %v749
        %v751 = vand.u32 %v750, 4294901760
        %752 = vmatpush.msra.mxu0 %v751
        %v753 = vand.u32 %v327, 4294901760
        %v754 = vsub.f32 %v327, %v753
        %v755 = vand.u32 %v754, 4294901760
        %v756 = vsub.f32 %v754, %v755
        %v757 = vand.u32 %v756, 4294901760
        %758 = vmatpush.msra.mxu0 %v757
        %v759 = vand.u32 %v326, 4294901760
        %v760 = vsub.f32 %v326, %v759
        %v761 = vand.u32 %v760, 4294901760
        %v762 = vsub.f32 %v760, %v761
        %v763 = vand.u32 %v762, 4294901760
        %764 = vmatpush.msra.mxu0 %v763
        %v765 = vand.u32 %v325, 4294901760
        %v766 = vsub.f32 %v325, %v765
        %v767 = vand.u32 %v766, 4294901760
        %v768 = vsub.f32 %v766, %v767
        %v769 = vand.u32 %v768, 4294901760
        %770 = vmatpush.msra.mxu0 %v769
        %v771 = vand.u32 %v324, 4294901760
        %v772 = vsub.f32 %v324, %v771
        %v773 = vand.u32 %v772, 4294901760
        %v774 = vsub.f32 %v772, %v773
        %v775 = vand.u32 %v774, 4294901760
        %776 = vmatpush.msra.mxu0 %v775
        %v777 = vand.u32 %v323, 4294901760
        %v778 = vsub.f32 %v323, %v777
        %v779 = vand.u32 %v778, 4294901760
        %v780 = vsub.f32 %v778, %v779
        %v781 = vand.u32 %v780, 4294901760
        %782 = vmatpush.msra.mxu0 %v781
        %v783 = vand.u32 %v322, 4294901760
        %v784 = vsub.f32 %v322, %v783
        %v785 = vand.u32 %v784, 4294901760
        %v786 = vsub.f32 %v784, %v785
        %v787 = vand.u32 %v786, 4294901760
        %788 = vmatpush.msra.mxu0 %v787
        %v789 = vand.u32 %v321, 4294901760
        %v790 = vsub.f32 %v321, %v789
        %v791 = vand.u32 %v790, 4294901760
        %v792 = vsub.f32 %v790, %v791
        %v793 = vand.u32 %v792, 4294901760
        %794 = vmatpush.msra.mxu0 %v793
        %v795 = vand.u32 %v320, 4294901760
        %v796 = vsub.f32 %v320, %v795
        %v797 = vand.u32 %v796, 4294901760
        %v798 = vsub.f32 %v796, %v797
        %v799 = vand.u32 %v798, 4294901760
        %800 = vmatpush.msra.mxu0 %v799
        %v801 = vand.u32 %v319, 4294901760
        %v802 = vsub.f32 %v319, %v801
        %v803 = vand.u32 %v802, 4294901760
        %v804 = vsub.f32 %v802, %v803
        %v805 = vand.u32 %v804, 4294901760
        %806 = vmatpush.msra.mxu0 %v805
        %v807 = vand.u32 %v318, 4294901760
        %v808 = vsub.f32 %v318, %v807
        %v809 = vand.u32 %v808, 4294901760
        %v810 = vsub.f32 %v808, %v809
        %v811 = vand.u32 %v810, 4294901760
        %812 = vmatpush.msra.mxu0 %v811
        %v813 = vand.u32 %v317, 4294901760
        %v814 = vsub.f32 %v317, %v813
        %v815 = vand.u32 %v814, 4294901760
        %v816 = vsub.f32 %v814, %v815
        %v817 = vand.u32 %v816, 4294901760
        %818 = vmatpush.msra.mxu0 %v817
        %v819 = vand.u32 %v316, 4294901760
        %v820 = vsub.f32 %v316, %v819
        %v821 = vand.u32 %v820, 4294901760
        %v822 = vsub.f32 %v820, %v821
        %v823 = vand.u32 %v822, 4294901760
        %824 = vmatpush.msra.mxu0 %v823
        %v825 = vand.u32 %v341, 4294901760
        %826 = vmatmul.f32.gmra.mxu0 %v825
        %v827 = vpop.f32.mrf.mxu0
        %v828 = vadd.f32 %v727, %v827
        %829 = vdwg.mxu0
        %v830 = vand.u32 %v331, 4294901760
        %v831 = vsub.f32 %v331, %v830
        %832 = vmatpush.msra.mxu0 %v831
        %v833 = vand.u32 %v330, 4294901760
        %v834 = vsub.f32 %v330, %v833
        %835 = vmatpush.msra.mxu0 %v834
        %v836 = vand.u32 %v329, 4294901760
        %v837 = vsub.f32 %v329, %v836
        %838 = vmatpush.msra.mxu0 %v837
        %v839 = vand.u32 %v328, 4294901760
        %v840 = vsub.f32 %v328, %v839
        %841 = vmatpush.msra.mxu0 %v840
        %v842 = vand.u32 %v327, 4294901760
        %v843 = vsub.f32 %v327, %v842
        %844 = vmatpush.msra.mxu0 %v843
        %v845 = vand.u32 %v326, 4294901760
        %v846 = vsub.f32 %v326, %v845
        %847 = vmatpush.msra.mxu0 %v846
        %v848 = vand.u32 %v325, 4294901760
        %v849 = vsub.f32 %v325, %v848
        %850 = vmatpush.msra.mxu0 %v849
        %v851 = vand.u32 %v324, 4294901760
        %v852 = vsub.f32 %v324, %v851
        %853 = vmatpush.msra.mxu0 %v852
        %v854 = vand.u32 %v323, 4294901760
        %v855 = vsub.f32 %v323, %v854
        %856 = vmatpush.msra.mxu0 %v855
        %v857 = vand.u32 %v322, 4294901760
        %v858 = vsub.f32 %v322, %v857
        %859 = vmatpush.msra.mxu0 %v858
        %v860 = vand.u32 %v321, 4294901760
        %v861 = vsub.f32 %v321, %v860
        %862 = vmatpush.msra.mxu0 %v861
        %v863 = vand.u32 %v320, 4294901760
        %v864 = vsub.f32 %v320, %v863
        %865 = vmatpush.msra.mxu0 %v864
        %v866 = vand.u32 %v319, 4294901760
        %v867 = vsub.f32 %v319, %v866
        %868 = vmatpush.msra.mxu0 %v867
        %v869 = vand.u32 %v318, 4294901760
        %v870 = vsub.f32 %v318, %v869
        %871 = vmatpush.msra.mxu0 %v870
        %v872 = vand.u32 %v317, 4294901760
        %v873 = vsub.f32 %v317, %v872
        %874 = vmatpush.msra.mxu0 %v873
        %v875 = vand.u32 %v316, 4294901760
        %v876 = vsub.f32 %v316, %v875
        %877 = vmatpush.msra.mxu0 %v876
        %v878 = vand.u32 %v341, 4294901760
        %v879 = vsub.f32 %v341, %v878
        %880 = vmatmul.f32.gmra.mxu0 %v879
        %v881 = vpop.f32.mrf.mxu0
        %v882 = vadd.f32 %v828, %v881
        %883 = vdwg.mxu0
        %v884 = vand.u32 %v331, 4294901760
        %885 = vmatpush.msra.mxu0 %v884
        %v886 = vand.u32 %v330, 4294901760
        %887 = vmatpush.msra.mxu0 %v886
        %v888 = vand.u32 %v329, 4294901760
        %889 = vmatpush.msra.mxu0 %v888
        %v890 = vand.u32 %v328, 4294901760
        %891 = vmatpush.msra.mxu0 %v890
        %v892 = vand.u32 %v327, 4294901760
        %893 = vmatpush.msra.mxu0 %v892
        %v894 = vand.u32 %v326, 4294901760
        %895 = vmatpush.msra.mxu0 %v894
        %v896 = vand.u32 %v325, 4294901760
        %897 = vmatpush.msra.mxu0 %v896
        %v898 = vand.u32 %v324, 4294901760
        %899 = vmatpush.msra.mxu0 %v898
        %v900 = vand.u32 %v323, 4294901760
        %901 = vmatpush.msra.mxu0 %v900
        %v902 = vand.u32 %v322, 4294901760
        %903 = vmatpush.msra.mxu0 %v902
        %v904 = vand.u32 %v321, 4294901760
        %905 = vmatpush.msra.mxu0 %v904
        %v906 = vand.u32 %v320, 4294901760
        %907 = vmatpush.msra.mxu0 %v906
        %v908 = vand.u32 %v319, 4294901760
        %909 = vmatpush.msra.mxu0 %v908
        %v910 = vand.u32 %v318, 4294901760
        %911 = vmatpush.msra.mxu0 %v910
        %v912 = vand.u32 %v317, 4294901760
        %913 = vmatpush.msra.mxu0 %v912
        %v914 = vand.u32 %v316, 4294901760
        %915 = vmatpush.msra.mxu0 %v914
        %v916 = vand.u32 %v341, 4294901760
        %v917 = vsub.f32 %v341, %v916
        %v918 = vand.u32 %v917, 4294901760
        %919 = vmatmul.f32.gmra.mxu0 %v918
        %v920 = vpop.f32.mrf.mxu0
        %v921 = vadd.f32 %v882, %v920
        %922 = vdwg.mxu0
        %v923 = vand.u32 %v331, 4294901760
        %v924 = vsub.f32 %v331, %v923
        %v925 = vand.u32 %v924, 4294901760
        %926 = vmatpush.msra.mxu0 %v925
        %v927 = vand.u32 %v330, 4294901760
        %v928 = vsub.f32 %v330, %v927
        %v929 = vand.u32 %v928, 4294901760
        %930 = vmatpush.msra.mxu0 %v929
        %v931 = vand.u32 %v329, 4294901760
        %v932 = vsub.f32 %v329, %v931
        %v933 = vand.u32 %v932, 4294901760
        %934 = vmatpush.msra.mxu0 %v933
        %v935 = vand.u32 %v328, 4294901760
        %v936 = vsub.f32 %v328, %v935
        %v937 = vand.u32 %v936, 4294901760
        %938 = vmatpush.msra.mxu0 %v937
        %v939 = vand.u32 %v327, 4294901760
        %v940 = vsub.f32 %v327, %v939
        %v941 = vand.u32 %v940, 4294901760
        %942 = vmatpush.msra.mxu0 %v941
        %v943 = vand.u32 %v326, 4294901760
        %v944 = vsub.f32 %v326, %v943
        %v945 = vand.u32 %v944, 4294901760
        %946 = vmatpush.msra.mxu0 %v945
        %v947 = vand.u32 %v325, 4294901760
        %v948 = vsub.f32 %v325, %v947
        %v949 = vand.u32 %v948, 4294901760
        %950 = vmatpush.msra.mxu0 %v949
        %v951 = vand.u32 %v324, 4294901760
        %v952 = vsub.f32 %v324, %v951
        %v953 = vand.u32 %v952, 4294901760
        %954 = vmatpush.msra.mxu0 %v953
        %v955 = vand.u32 %v323, 4294901760
        %v956 = vsub.f32 %v323, %v955
        %v957 = vand.u32 %v956, 4294901760
        %958 = vmatpush.msra.mxu0 %v957
        %v959 = vand.u32 %v322, 4294901760
        %v960 = vsub.f32 %v322, %v959
        %v961 = vand.u32 %v960, 4294901760
        %962 = vmatpush.msra.mxu0 %v961
        %v963 = vand.u32 %v321, 4294901760
        %v964 = vsub.f32 %v321, %v963
        %v965 = vand.u32 %v964, 4294901760
        %966 = vmatpush.msra.mxu0 %v965
        %v967 = vand.u32 %v320, 4294901760
        %v968 = vsub.f32 %v320, %v967
        %v969 = vand.u32 %v968, 4294901760
        %970 = vmatpush.msra.mxu0 %v969
        %v971 = vand.u32 %v319, 4294901760
        %v972 = vsub.f32 %v319, %v971
        %v973 = vand.u32 %v972, 4294901760
        %974 = vmatpush.msra.mxu0 %v973
        %v975 = vand.u32 %v318, 4294901760
        %v976 = vsub.f32 %v318, %v975
        %v977 = vand.u32 %v976, 4294901760
        %978 = vmatpush.msra.mxu0 %v977
        %v979 = vand.u32 %v317, 4294901760
        %v980 = vsub.f32 %v317, %v979
        %v981 = vand.u32 %v980, 4294901760
        %982 = vmatpush.msra.mxu0 %v981
        %v983 = vand.u32 %v316, 4294901760
        %v984 = vsub.f32 %v316, %v983
        %v985 = vand.u32 %v984, 4294901760
        %986 = vmatpush.msra.mxu0 %v985
        %v987 = vand.u32 %v341, 4294901760
        %988 = vmatmul.f32.gmra.mxu0 %v987
        %v989 = vpop.f32.mrf.mxu0
        %v990 = vadd.f32 %v921, %v989
        %991 = vdwg.mxu0
        %v992 = vand.u32 %v331, 4294901760
        %993 = vmatpush.msra.mxu0 %v992
        %v994 = vand.u32 %v330, 4294901760
        %995 = vmatpush.msra.mxu0 %v994
        %v996 = vand.u32 %v329, 4294901760
        %997 = vmatpush.msra.mxu0 %v996
        %v998 = vand.u32 %v328, 4294901760
        %999 = vmatpush.msra.mxu0 %v998
        %v1000 = vand.u32 %v327, 4294901760
        %1001 = vmatpush.msra.mxu0 %v1000
        %v1002 = vand.u32 %v326, 4294901760
        %1003 = vmatpush.msra.mxu0 %v1002
        %v1004 = vand.u32 %v325, 4294901760
        %1005 = vmatpush.msra.mxu0 %v1004
        %v1006 = vand.u32 %v324, 4294901760
        %1007 = vmatpush.msra.mxu0 %v1006
        %v1008 = vand.u32 %v323, 4294901760
        %1009 = vmatpush.msra.mxu0 %v1008
        %v1010 = vand.u32 %v322, 4294901760
        %1011 = vmatpush.msra.mxu0 %v1010
        %v1012 = vand.u32 %v321, 4294901760
        %1013 = vmatpush.msra.mxu0 %v1012
        %v1014 = vand.u32 %v320, 4294901760
        %1015 = vmatpush.msra.mxu0 %v1014
        %v1016 = vand.u32 %v319, 4294901760
        %1017 = vmatpush.msra.mxu0 %v1016
        %v1018 = vand.u32 %v318, 4294901760
        %1019 = vmatpush.msra.mxu0 %v1018
        %v1020 = vand.u32 %v317, 4294901760
        %1021 = vmatpush.msra.mxu0 %v1020
        %v1022 = vand.u32 %v316, 4294901760
        %1023 = vmatpush.msra.mxu0 %v1022
        %v1024 = vand.u32 %v341, 4294901760
        %1025 = vmatmul.f32.gmra.mxu0 %v1024
        %v1026 = vpop.f32.mrf.mxu0
        %v1027 = vadd.f32 %v990, %v1026
        %1028 = vdwg.mxu0
        %1029 = vmatpush.msra.mxu0 0.0
        %1030 = vmatpush.msra.mxu0 0.0
        %1031 = vmatpush.msra.mxu0 0.0
        %1032 = vmatpush.msra.mxu0 0.0
        %1033 = vmatpush.msra.mxu0 0.0
        %1034 = vmatpush.msra.mxu0 0.0
        %1035 = vmatpush.msra.mxu0 0.0
        %1036 = vmatpush.msra.mxu0 0.0
        %v1037 = vand.u32 %v339, 4294901760
        %1038 = vmatpush.msra.mxu0 %v1037
        %v1039 = vand.u32 %v338, 4294901760
        %1040 = vmatpush.msra.mxu0 %v1039
        %v1041 = vand.u32 %v337, 4294901760
        %1042 = vmatpush.msra.mxu0 %v1041
        %v1043 = vand.u32 %v336, 4294901760
        %1044 = vmatpush.msra.mxu0 %v1043
        %v1045 = vand.u32 %v335, 4294901760
        %1046 = vmatpush.msra.mxu0 %v1045
        %v1047 = vand.u32 %v334, 4294901760
        %1048 = vmatpush.msra.mxu0 %v1047
        %v1049 = vand.u32 %v333, 4294901760
        %1050 = vmatpush.msra.mxu0 %v1049
        %v1051 = vand.u32 %v332, 4294901760
        %1052 = vmatpush.msra.mxu0 %v1051
        %v1053 = vand.u32 %v345, 4294901760
        %v1054 = vsub.f32 %v345, %v1053
        %v1055 = vand.u32 %v1054, 4294901760
        %v1056 = vsub.f32 %v1054, %v1055
        %v1057 = vand.u32 %v1056, 4294901760
        %1058 = vmatmul.f32.gmra.mxu0 %v1057
        %v1059 = vpop.f32.mrf.mxu0
        %v1060 = vadd.f32 %v1027, %v1059
        %1061 = vdwg.mxu0
        %1062 = vmatpush.msra.mxu0 0.0
        %1063 = vmatpush.msra.mxu0 0.0
        %1064 = vmatpush.msra.mxu0 0.0
        %1065 = vmatpush.msra.mxu0 0.0
        %1066 = vmatpush.msra.mxu0 0.0
        %1067 = vmatpush.msra.mxu0 0.0
        %1068 = vmatpush.msra.mxu0 0.0
        %1069 = vmatpush.msra.mxu0 0.0
        %v1070 = vand.u32 %v339, 4294901760
        %v1071 = vsub.f32 %v339, %v1070
        %v1072 = vand.u32 %v1071, 4294901760
        %v1073 = vsub.f32 %v1071, %v1072
        %v1074 = vand.u32 %v1073, 4294901760
        %1075 = vmatpush.msra.mxu0 %v1074
        %v1076 = vand.u32 %v338, 4294901760
        %v1077 = vsub.f32 %v338, %v1076
        %v1078 = vand.u32 %v1077, 4294901760
        %v1079 = vsub.f32 %v1077, %v1078
        %v1080 = vand.u32 %v1079, 4294901760
        %1081 = vmatpush.msra.mxu0 %v1080
        %v1082 = vand.u32 %v337, 4294901760
        %v1083 = vsub.f32 %v337, %v1082
        %v1084 = vand.u32 %v1083, 4294901760
        %v1085 = vsub.f32 %v1083, %v1084
        %v1086 = vand.u32 %v1085, 4294901760
        %1087 = vmatpush.msra.mxu0 %v1086
        %v1088 = vand.u32 %v336, 4294901760
        %v1089 = vsub.f32 %v336, %v1088
        %v1090 = vand.u32 %v1089, 4294901760
        %v1091 = vsub.f32 %v1089, %v1090
        %v1092 = vand.u32 %v1091, 4294901760
        %1093 = vmatpush.msra.mxu0 %v1092
        %v1094 = vand.u32 %v335, 4294901760
        %v1095 = vsub.f32 %v335, %v1094
        %v1096 = vand.u32 %v1095, 4294901760
        %v1097 = vsub.f32 %v1095, %v1096
        %v1098 = vand.u32 %v1097, 4294901760
        %1099 = vmatpush.msra.mxu0 %v1098
        %v1100 = vand.u32 %v334, 4294901760
        %v1101 = vsub.f32 %v334, %v1100
        %v1102 = vand.u32 %v1101, 4294901760
        %v1103 = vsub.f32 %v1101, %v1102
        %v1104 = vand.u32 %v1103, 4294901760
        %1105 = vmatpush.msra.mxu0 %v1104
        %v1106 = vand.u32 %v333, 4294901760
        %v1107 = vsub.f32 %v333, %v1106
        %v1108 = vand.u32 %v1107, 4294901760
        %v1109 = vsub.f32 %v1107, %v1108
        %v1110 = vand.u32 %v1109, 4294901760
        %1111 = vmatpush.msra.mxu0 %v1110
        %v1112 = vand.u32 %v332, 4294901760
        %v1113 = vsub.f32 %v332, %v1112
        %v1114 = vand.u32 %v1113, 4294901760
        %v1115 = vsub.f32 %v1113, %v1114
        %v1116 = vand.u32 %v1115, 4294901760
        %1117 = vmatpush.msra.mxu0 %v1116
        %v1118 = vand.u32 %v345, 4294901760
        %1119 = vmatmul.f32.gmra.mxu0 %v1118
        %v1120 = vpop.f32.mrf.mxu0
        %v1121 = vadd.f32 %v1060, %v1120
        %1122 = vdwg.mxu0
        %1123 = vmatpush.msra.mxu0 0.0
        %1124 = vmatpush.msra.mxu0 0.0
        %1125 = vmatpush.msra.mxu0 0.0
        %1126 = vmatpush.msra.mxu0 0.0
        %1127 = vmatpush.msra.mxu0 0.0
        %1128 = vmatpush.msra.mxu0 0.0
        %1129 = vmatpush.msra.mxu0 0.0
        %1130 = vmatpush.msra.mxu0 0.0
        %v1131 = vand.u32 %v339, 4294901760
        %v1132 = vsub.f32 %v339, %v1131
        %1133 = vmatpush.msra.mxu0 %v1132
        %v1134 = vand.u32 %v338, 4294901760
        %v1135 = vsub.f32 %v338, %v1134
        %1136 = vmatpush.msra.mxu0 %v1135
        %v1137 = vand.u32 %v337, 4294901760
        %v1138 = vsub.f32 %v337, %v1137
        %1139 = vmatpush.msra.mxu0 %v1138
        %v1140 = vand.u32 %v336, 4294901760
        %v1141 = vsub.f32 %v336, %v1140
        %1142 = vmatpush.msra.mxu0 %v1141
        %v1143 = vand.u32 %v335, 4294901760
        %v1144 = vsub.f32 %v335, %v1143
        %1145 = vmatpush.msra.mxu0 %v1144
        %v1146 = vand.u32 %v334, 4294901760
        %v1147 = vsub.f32 %v334, %v1146
        %1148 = vmatpush.msra.mxu0 %v1147
        %v1149 = vand.u32 %v333, 4294901760
        %v1150 = vsub.f32 %v333, %v1149
        %1151 = vmatpush.msra.mxu0 %v1150
        %v1152 = vand.u32 %v332, 4294901760
        %v1153 = vsub.f32 %v332, %v1152
        %1154 = vmatpush.msra.mxu0 %v1153
        %v1155 = vand.u32 %v345, 4294901760
        %v1156 = vsub.f32 %v345, %v1155
        %1157 = vmatmul.f32.gmra.mxu0 %v1156
        %v1158 = vpop.f32.mrf.mxu0
        %v1159 = vadd.f32 %v1121, %v1158
        %1160 = vdwg.mxu0
        %1161 = vmatpush.msra.mxu0 0.0
        %1162 = vmatpush.msra.mxu0 0.0
        %1163 = vmatpush.msra.mxu0 0.0
        %1164 = vmatpush.msra.mxu0 0.0
        %1165 = vmatpush.msra.mxu0 0.0
        %1166 = vmatpush.msra.mxu0 0.0
        %1167 = vmatpush.msra.mxu0 0.0
        %1168 = vmatpush.msra.mxu0 0.0
        %v1169 = vand.u32 %v339, 4294901760
        %1170 = vmatpush.msra.mxu0 %v1169
        %v1171 = vand.u32 %v338, 4294901760
        %1172 = vmatpush.msra.mxu0 %v1171
        %v1173 = vand.u32 %v337, 4294901760
        %1174 = vmatpush.msra.mxu0 %v1173
        %v1175 = vand.u32 %v336, 4294901760
        %1176 = vmatpush.msra.mxu0 %v1175
        %v1177 = vand.u32 %v335, 4294901760
        %1178 = vmatpush.msra.mxu0 %v1177
        %v1179 = vand.u32 %v334, 4294901760
        %1180 = vmatpush.msra.mxu0 %v1179
        %v1181 = vand.u32 %v333, 4294901760
        %1182 = vmatpush.msra.mxu0 %v1181
        %v1183 = vand.u32 %v332, 4294901760
        %1184 = vmatpush.msra.mxu0 %v1183
        %v1185 = vand.u32 %v345, 4294901760
        %v1186 = vsub.f32 %v345, %v1185
        %v1187 = vand.u32 %v1186, 4294901760
        %1188 = vmatmul.f32.gmra.mxu0 %v1187
        %v1189 = vpop.f32.mrf.mxu0
        %v1190 = vadd.f32 %v1159, %v1189
        %1191 = vdwg.mxu0
        %1192 = vmatpush.msra.mxu0 0.0
        %1193 = vmatpush.msra.mxu0 0.0
        %1194 = vmatpush.msra.mxu0 0.0
        %1195 = vmatpush.msra.mxu0 0.0
        %1196 = vmatpush.msra.mxu0 0.0
        %1197 = vmatpush.msra.mxu0 0.0
        %1198 = vmatpush.msra.mxu0 0.0
        %1199 = vmatpush.msra.mxu0 0.0
        %v1200 = vand.u32 %v339, 4294901760
        %v1201 = vsub.f32 %v339, %v1200
        %v1202 = vand.u32 %v1201, 4294901760
        %1203 = vmatpush.msra.mxu0 %v1202
        %v1204 = vand.u32 %v338, 4294901760
        %v1205 = vsub.f32 %v338, %v1204
        %v1206 = vand.u32 %v1205, 4294901760
        %1207 = vmatpush.msra.mxu0 %v1206
        %v1208 = vand.u32 %v337, 4294901760
        %v1209 = vsub.f32 %v337, %v1208
        %v1210 = vand.u32 %v1209, 4294901760
        %1211 = vmatpush.msra.mxu0 %v1210
        %v1212 = vand.u32 %v336, 4294901760
        %v1213 = vsub.f32 %v336, %v1212
        %v1214 = vand.u32 %v1213, 4294901760
        %1215 = vmatpush.msra.mxu0 %v1214
        %v1216 = vand.u32 %v335, 4294901760
        %v1217 = vsub.f32 %v335, %v1216
        %v1218 = vand.u32 %v1217, 4294901760
        %1219 = vmatpush.msra.mxu0 %v1218
        %v1220 = vand.u32 %v334, 4294901760
        %v1221 = vsub.f32 %v334, %v1220
        %v1222 = vand.u32 %v1221, 4294901760
        %1223 = vmatpush.msra.mxu0 %v1222
        %v1224 = vand.u32 %v333, 4294901760
        %v1225 = vsub.f32 %v333, %v1224
        %v1226 = vand.u32 %v1225, 4294901760
        %1227 = vmatpush.msra.mxu0 %v1226
        %v1228 = vand.u32 %v332, 4294901760
        %v1229 = vsub.f32 %v332, %v1228
        %v1230 = vand.u32 %v1229, 4294901760
        %1231 = vmatpush.msra.mxu0 %v1230
        %v1232 = vand.u32 %v345, 4294901760
        %1233 = vmatmul.f32.gmra.mxu0 %v1232
        %v1234 = vpop.f32.mrf.mxu0
        %v1235 = vadd.f32 %v1190, %v1234
        %1236 = vdwg.mxu0
        %1237 = vmatpush.msra.mxu0 0.0
        %1238 = vmatpush.msra.mxu0 0.0
        %1239 = vmatpush.msra.mxu0 0.0
        %1240 = vmatpush.msra.mxu0 0.0
        %1241 = vmatpush.msra.mxu0 0.0
        %1242 = vmatpush.msra.mxu0 0.0
        %1243 = vmatpush.msra.mxu0 0.0
        %1244 = vmatpush.msra.mxu0 0.0
        %v1245 = vand.u32 %v339, 4294901760
        %1246 = vmatpush.msra.mxu0 %v1245
        %v1247 = vand.u32 %v338, 4294901760
        %1248 = vmatpush.msra.mxu0 %v1247
        %v1249 = vand.u32 %v337, 4294901760
        %1250 = vmatpush.msra.mxu0 %v1249
        %v1251 = vand.u32 %v336, 4294901760
        %1252 = vmatpush.msra.mxu0 %v1251
        %v1253 = vand.u32 %v335, 4294901760
        %1254 = vmatpush.msra.mxu0 %v1253
        %v1255 = vand.u32 %v334, 4294901760
        %1256 = vmatpush.msra.mxu0 %v1255
        %v1257 = vand.u32 %v333, 4294901760
        %1258 = vmatpush.msra.mxu0 %v1257
        %v1259 = vand.u32 %v332, 4294901760
        %1260 = vmatpush.msra.mxu0 %v1259
        %v1261 = vand.u32 %v345, 4294901760
        %1262 = vmatmul.f32.gmra.mxu0 %v1261
        %v1263 = vpop.f32.mrf.mxu0
        %v1264 = vadd.f32 %v1235, %v1263
        %1265 = vdwg.mxu0
        %1266 = vst [vmem:[%s134] sm:$0xff] %v1264
        %s1267 = sand.u32 %s52, 1
        %s1268 = scalar_lea.sflag [#allocation4], %s1267
        %s1269 = sand.u32 %s52, 1
        %s1270 = smul.addr %s1269, 8
        %s1271 = scalar_lea.vmem [#allocation5], %s1270
        // Predicated region
        $region29: #{tpu_custom_call.1} parent=23 // pred_check
          %p1272 = pneg %p62
        $region30: #{tpu_custom_call.1} parent=23 // pred_check_branch
          %1274 = sbr.rel (%p1272) target = $region32
        $region31: #{tpu_custom_call.1} parent=23 // pred_region
          %1276 = vsyncadd %s1268, 0
          %s1277 = smul.addr %s18, 8
          %s1278 = scalar_lea.hbm %s1, %s1277
          %s1280 = sshll.u32 %s1271, 4
          %s1281 = int_to_ptr.vmem [resolvable:$true] %s1280
          %s1282 = sshll.u32 %s1278, 4
          %s1283 = int_to_ptr.hbm [resolvable:$true] %s1282
          %1285 = dma.vmem_to_hbm [thread:$0]  %s1281, 128, %s1283, %s1268
        $region32: #{tpu_custom_call.1} parent=23 // pred_fallthru
          _
      $region24: #{tpu_custom_call.1} parent=5 // pred_fallthru
        _
      %p1286 = scmp.le.s32.totalorder 2, %s13
      // Predicated region
      $region33: #{tpu_custom_call.1} parent=5 // pred_check
        %p1287 = pneg %p1286
      $region34: #{tpu_custom_call.1} parent=5 // pred_check_branch
        %1289 = sbr.rel (%p1287) target = $region36
      $region35: #{tpu_custom_call.1} parent=5 // pred_region
        %s1290 = ssub.s32 %s13, 2
        // Predicated region
        $region37: #{tpu_custom_call.1} parent=35 // pred_check
          %p1291 = pneg %p68
        $region38: #{tpu_custom_call.1} parent=35 // pred_check_branch
          %1293 = sbr.rel (%p1291) target = $region40
        $region39: #{tpu_custom_call.1} parent=35 // pred_region
          %s1294 = sand.u32 %s53, 1
          %s1295 = scalar_lea.sflag [#allocation4], %s1294
          %s1296 = sand.u32 %s53, 1
          %s1297 = smul.addr %s1296, 8
          %s1298 = scalar_lea.vmem [#allocation5], %s1297
          %1300 = dma.done %s1295, 128
        $region40: #{tpu_custom_call.1} parent=35 // pred_fallthru
          _
      $region36: #{tpu_custom_call.1} parent=5 // pred_fallthru
        _
    $region6: #{tpu_custom_call.1} parent=1 // loop_footer
      %s17 = sadd.s32 1, %s13
    $region7: #{tpu_custom_call.1} parent=1 // loop_footer_branch
      %12 = sbr.rel target = $region3
    $region8: #{tpu_custom_call.1} parent=1 // loop_exit
      _
    %1301 = vsyncpa [#allocation3], 1
    %s1302 = scalar_lea.sflag [#allocation3], 1
    %1303 = vsyncpa %s1302, 1
    %1304 = vsyncpa [#allocation4], 1
    %s1305 = scalar_lea.sflag [#allocation4], 1
    %1306 = vsyncpa %s1305, 1

</llo_original>
